<compile_context>
chip_gen: v7x
topology: tpu7x:2x2x1
jax: 0.10.0
libtpu: 0.0.40
codegen_flags: <defaults>
</compile_context>

<pallas_src>
import jax
import jax.numpy as jnp
import numpy as np
from jax.experimental import pallas as pl
from jax.experimental.pallas import tpu as pltpu


def gaussian_histogram(x, bins, vmin, vmax, sigma, *,
                       lane=512, rows_per_step=8, splits=2):
    """Soft (Gaussian) histogram of a 1-D array `x` (Pallas TPU kernel)."""
    x = jnp.asarray(x, jnp.float32).reshape(-1)
    n = x.shape[0]

    bins = int(bins)
    sigma = float(sigma)
    delta = float(vmax - vmin) / float(bins)
    k = -0.5 / (sigma * sigma)                      # folded: exp(k * d * d)
    scale = delta / (sigma * float(np.sqrt(2.0 * np.pi)))  # applied in epilogue

    centers = float(vmin) + delta * (jnp.arange(bins, dtype=jnp.float32) + 0.5)
    centers_col = centers.reshape(bins, 1)          # (bins, 1)

    # Pad to a multiple of (splits * rows_per_step * lane) with a sentinel whose
    # Gaussian weight underflows to exactly 0 in float32.
    chunk = splits * rows_per_step * lane
    pad = (-n) % chunk
    if pad:
        sentinel = float(vmax) + 40.0 * sigma       # exp(-800) == 0.0 in f32
        x = jnp.concatenate([x, jnp.full((pad,), sentinel, jnp.float32)])
    total = n + pad
    steps = total // chunk                          # grid steps per split
    x3 = x.reshape(splits, steps * rows_per_step, lane)

    def kernel(x_ref, c_ref, o_ref, acc_ref):
        # x_ref: (rows_per_step, lane)   c_ref: (bins, 1)
        # o_ref: (bins, 1)               acc_ref: (bins, lane) scratch
        step = pl.program_id(1)

        @pl.when(step == 0)
        def _init():
            acc_ref[...] = jnp.zeros_like(acc_ref)

        c = c_ref[...]                              # (bins, 1)
        # Static unrolled row loop: each row broadcasts as (1, lane) against
        # (bins, 1) centers; only lane-wise VPU adds per step (no XLU, no scale).
        for r in range(rows_per_step):
            row = x_ref[pl.ds(r, 1), :]             # (1, lane), static slice
            d = row - c                             # (bins, lane)
            acc_ref[...] += jnp.exp(k * (d * d))

        @pl.when(step == pl.num_programs(1) - 1)
        def _finalize():
            # Single cross-lane reduce + constant scale, once per split.
            o_ref[...] = scale * jnp.sum(acc_ref[...], axis=1, keepdims=True)

    out_parts = pl.pallas_call(
        kernel,
        out_shape=jax.ShapeDtypeStruct((splits, bins, 1), jnp.float32),
        grid_spec=pltpu.PrefetchScalarGridSpec(
            num_scalar_prefetch=0,
            grid=(splits, steps),
            in_specs=[
                # x tile: squeeze the split axis, dense (rows_per_step, lane).
                pl.BlockSpec((None, rows_per_step, lane), lambda s, i: (s, i, 0)),
                # centers: full (bins, 1), same block every step.
                pl.BlockSpec((bins, 1), lambda s, i: (0, 0)),
            ],
            # One resident partial-histogram block per split (written in epilogue).
            out_specs=pl.BlockSpec((None, bins, 1), lambda s, i: (s, 0, 0)),
            scratch_shapes=[pltpu.VMEM((bins, lane), jnp.float32)],
        ),
        compiler_params=pltpu.CompilerParams(
            # split axis may run on both TensorCores (v7x); reduction axis is
            # sequential with the resident accumulator.
            dimension_semantics=("parallel", "arbitrary"),
        ),
    )(x3, centers_col)

    # Combine the per-core partials.
    return out_parts.sum(axis=0).reshape(bins)


def gaussian_histogram_ref(x, bins, vmin, vmax, sigma):
    """Plain-JAX reference mirroring the PyTorch forward exactly."""
    x = jnp.asarray(x, jnp.float32)
    delta = float(vmax - vmin) / float(bins)
    centers = float(vmin) + delta * (jnp.arange(bins, dtype=jnp.float32) + 0.5)
    d = x[None, :] - centers[:, None]
    g = jnp.exp(-0.5 * (d / sigma) ** 2) / (sigma * np.sqrt(np.pi * 2.0)) * delta
    return g.sum(axis=1)


if __name__ == "__main__":
    key = jax.random.PRNGKey(0)
    N = 16384                      # 2 splits x 2 grid steps x 4096 samples/step
    bins = 16
    vmin, vmax, sigma = 0.0, 1.0, 0.1

    x = jax.random.uniform(key, (N,), dtype=jnp.float32, minval=vmin, maxval=vmax)

    out = gaussian_histogram(x, bins, vmin, vmax, sigma)
    out = jax.block_until_ready(out)

    ref = gaussian_histogram_ref(x, bins, vmin, vmax, sigma)
    assert out.shape == (bins,) and out.dtype == jnp.float32
    # atol loosened slightly vs 1e-5: accumulation order differs from the
    # single jnp.sum reference at N=16k (values are O(1e3)).
    np.testing.assert_allclose(np.asarray(out), np.asarray(ref),
                               rtol=1e-5, atol=1e-3)

    print("KERNEL_OK")
</pallas_src>

<mosaic_0001>
module attributes {stable_mosaic.version = 11 : i64} {
  func.func @kernel(%arg0: i32, %arg1: i32, %arg2: memref<1x8x512xf32, #tpu.memory_space<vmem>>, %arg3: memref<16x1xf32, #tpu.memory_space<vmem>>, %arg4: memref<1x16x1xf32, #tpu.memory_space<vmem>>, %arg5: memref<16x512xf32, #tpu.memory_space<vmem>>) attributes {dimension_semantics = [#tpu.dimension_semantics<parallel>, #tpu.dimension_semantics<arbitrary>], iteration_bounds = array<i64: 2, 2>, scalar_prefetch = 0 : i64, scratch_operands = 1 : i64, tpu.core_type = #tpu.core_type<tc>, window_params = [{transform_indices = @transform_0, window_bounds = array<i64: 1, 8, 512>}, {pipeline_mode = #tpu.pipeline_mode<synchronous>, transform_indices = @transform_1, window_bounds = array<i64: 16, 1>}, {transform_indices = @transform_2, window_bounds = array<i64: 1, 16, 1>}]} {
    %c0_i32 = arith.constant 0 : i32
    %0 = arith.cmpi eq, %arg1, %c0_i32 : i32
    %1 = arith.extui %0 : i1 to i32
    %c0_i32_0 = arith.constant 0 : i32
    %2 = arith.cmpi ne, %1, %c0_i32_0 : i32
    scf.if %2 {
      %cst_59 = arith.constant 0.000000e+00 : f32
      %103 = vector.broadcast %cst_59 : f32 to vector<16x512xf32>
      %c0_60 = arith.constant 0 : index
      %c0_61 = arith.constant 0 : index
      %104 = vector.load %arg5[%c0_60, %c0_61] : memref<16x512xf32, #tpu.memory_space<vmem>>, vector<16x512xf32>
      tpu.vector_store %arg5[%c0_60, %c0_61], %103 {strides = array<i32>} : memref<16x512xf32, #tpu.memory_space<vmem>>, vector<16x512xf32>,
    } else {
    }
    %c0 = arith.constant 0 : index
    %c0_1 = arith.constant 0 : index
    %3 = vector.load %arg3[%c0, %c0_1] : memref<16x1xf32, #tpu.memory_space<vmem>>, vector<16x1xf32>
    %c0_2 = arith.constant 0 : index
    %c0_3 = arith.constant 0 : index
    %c0_4 = arith.constant 0 : index
    %4 = vector.load %arg2[%c0_2, %c0_3, %c0_4] : memref<1x8x512xf32, #tpu.memory_space<vmem>>, vector<1x1x512xf32>
    %5 = vector.shape_cast %4 : vector<1x1x512xf32> to vector<1x512xf32>
    %6 = vector.broadcast %5 : vector<1x512xf32> to vector<16x512xf32>
    %7 = vector.broadcast %3 : vector<16x1xf32> to vector<16x512xf32>
    %8 = arith.subf %6, %7 : vector<16x512xf32>
    %c0_5 = arith.constant 0 : index
    %c0_6 = arith.constant 0 : index
    %9 = vector.load %arg5[%c0_5, %c0_6] : memref<16x512xf32, #tpu.memory_space<vmem>>, vector<16x512xf32>
    %10 = arith.mulf %8, %8 : vector<16x512xf32>
    %cst = arith.constant -5.000000e+01 : f32
    %11 = vector.broadcast %cst : f32 to vector<16x512xf32>
    %12 = arith.mulf %11, %10 : vector<16x512xf32>
    %13 = math.exp %12 : vector<16x512xf32>
    %14 = arith.addf %9, %13 : vector<16x512xf32>
    %c0_7 = arith.constant 0 : index
    %c0_8 = arith.constant 0 : index
    %15 = vector.load %arg5[%c0_7, %c0_8] : memref<16x512xf32, #tpu.memory_space<vmem>>, vector<16x512xf32>
    tpu.vector_store %arg5[%c0_7, %c0_8], %14 {strides = array<i32>} : memref<16x512xf32, #tpu.memory_space<vmem>>, vector<16x512xf32>,
    %c0_9 = arith.constant 0 : index
    %c1 = arith.constant 1 : index
    %c0_10 = arith.constant 0 : index
    %16 = vector.load %arg2[%c0_9, %c1, %c0_10] : memref<1x8x512xf32, #tpu.memory_space<vmem>>, vector<1x1x512xf32>
    %17 = vector.shape_cast %16 : vector<1x1x512xf32> to vector<1x512xf32>
    %18 = vector.broadcast %17 : vector<1x512xf32> to vector<16x512xf32>
    %19 = vector.broadcast %3 : vector<16x1xf32> to vector<16x512xf32>
    %20 = arith.subf %18, %19 : vector<16x512xf32>
    %c0_11 = arith.constant 0 : index
    %c0_12 = arith.constant 0 : index
    %21 = vector.load %arg5[%c0_11, %c0_12] : memref<16x512xf32, #tpu.memory_space<vmem>>, vector<16x512xf32>
    %22 = arith.mulf %20, %20 : vector<16x512xf32>
    %cst_13 = arith.constant -5.000000e+01 : f32
    %23 = vector.broadcast %cst_13 : f32 to vector<16x512xf32>
    %24 = arith.mulf %23, %22 : vector<16x512xf32>
    %25 = math.exp %24 : vector<16x512xf32>
    %26 = arith.addf %21, %25 : vector<16x512xf32>
    %c0_14 = arith.constant 0 : index
    %c0_15 = arith.constant 0 : index
    %27 = vector.load %arg5[%c0_14, %c0_15] : memref<16x512xf32, #tpu.memory_space<vmem>>, vector<16x512xf32>
    tpu.vector_store %arg5[%c0_14, %c0_15], %26 {strides = array<i32>} : memref<16x512xf32, #tpu.memory_space<vmem>>, vector<16x512xf32>,
    %c0_16 = arith.constant 0 : index
    %c2 = arith.constant 2 : index
    %c0_17 = arith.constant 0 : index
    %28 = vector.load %arg2[%c0_16, %c2, %c0_17] : memref<1x8x512xf32, #tpu.memory_space<vmem>>, vector<1x1x512xf32>
    %29 = vector.shape_cast %28 : vector<1x1x512xf32> to vector<1x512xf32>
    %30 = vector.broadcast %29 : vector<1x512xf32> to vector<16x512xf32>
    %31 = vector.broadcast %3 : vector<16x1xf32> to vector<16x512xf32>
    %32 = arith.subf %30, %31 : vector<16x512xf32>
    %c0_18 = arith.constant 0 : index
    %c0_19 = arith.constant 0 : index
    %33 = vector.load %arg5[%c0_18, %c0_19] : memref<16x512xf32, #tpu.memory_space<vmem>>, vector<16x512xf32>
    %34 = arith.mulf %32, %32 : vector<16x512xf32>
    %cst_20 = arith.constant -5.000000e+01 : f32
    %35 = vector.broadcast %cst_20 : f32 to vector<16x512xf32>
    %36 = arith.mulf %35, %34 : vector<16x512xf32>
    %37 = math.exp %36 : vector<16x512xf32>
    %38 = arith.addf %33, %37 : vector<16x512xf32>
    %c0_21 = arith.constant 0 : index
    %c0_22 = arith.constant 0 : index
    %39 = vector.load %arg5[%c0_21, %c0_22] : memref<16x512xf32, #tpu.memory_space<vmem>>, vector<16x512xf32>
    tpu.vector_store %arg5[%c0_21, %c0_22], %38 {strides = array<i32>} : memref<16x512xf32, #tpu.memory_space<vmem>>, vector<16x512xf32>,
    %c0_23 = arith.constant 0 : index
    %c3 = arith.constant 3 : index
    %c0_24 = arith.constant 0 : index
    %40 = vector.load %arg2[%c0_23, %c3, %c0_24] : memref<1x8x512xf32, #tpu.memory_space<vmem>>, vector<1x1x512xf32>
    %41 = vector.shape_cast %40 : vector<1x1x512xf32> to vector<1x512xf32>
    %42 = vector.broadcast %41 : vector<1x512xf32> to vector<16x512xf32>
    %43 = vector.broadcast %3 : vector<16x1xf32> to vector<16x512xf32>
    %44 = arith.subf %42, %43 : vector<16x512xf32>
    %c0_25 = arith.constant 0 : index
    %c0_26 = arith.constant 0 : index
    %45 = vector.load %arg5[%c0_25, %c0_26] : memref<16x512xf32, #tpu.memory_space<vmem>>, vector<16x512xf32>
    %46 = arith.mulf %44, %44 : vector<16x512xf32>
    %cst_27 = arith.constant -5.000000e+01 : f32
    %47 = vector.broadcast %cst_27 : f32 to vector<16x512xf32>
    %48 = arith.mulf %47, %46 : vector<16x512xf32>
    %49 = math.exp %48 : vector<16x512xf32>
    %50 = arith.addf %45, %49 : vector<16x512xf32>
    %c0_28 = arith.constant 0 : index
    %c0_29 = arith.constant 0 : index
    %51 = vector.load %arg5[%c0_28, %c0_29] : memref<16x512xf32, #tpu.memory_space<vmem>>, vector<16x512xf32>
    tpu.vector_store %arg5[%c0_28, %c0_29], %50 {strides = array<i32>} : memref<16x512xf32, #tpu.memory_space<vmem>>, vector<16x512xf32>,
    %c0_30 = arith.constant 0 : index
    %c4 = arith.constant 4 : index
    %c0_31 = arith.constant 0 : index
    %52 = vector.load %arg2[%c0_30, %c4, %c0_31] : memref<1x8x512xf32, #tpu.memory_space<vmem>>, vector<1x1x512xf32>
    %53 = vector.shape_cast %52 : vector<1x1x512xf32> to vector<1x512xf32>
    %54 = vector.broadcast %53 : vector<1x512xf32> to vector<16x512xf32>
    %55 = vector.broadcast %3 : vector<16x1xf32> to vector<16x512xf32>
    %56 = arith.subf %54, %55 : vector<16x512xf32>
    %c0_32 = arith.constant 0 : index
    %c0_33 = arith.constant 0 : index
    %57 = vector.load %arg5[%c0_32, %c0_33] : memref<16x512xf32, #tpu.memory_space<vmem>>, vector<16x512xf32>
    %58 = arith.mulf %56, %56 : vector<16x512xf32>
    %cst_34 = arith.constant -5.000000e+01 : f32
    %59 = vector.broadcast %cst_34 : f32 to vector<16x512xf32>
    %60 = arith.mulf %59, %58 : vector<16x512xf32>
    %61 = math.exp %60 : vector<16x512xf32>
    %62 = arith.addf %57, %61 : vector<16x512xf32>
    %c0_35 = arith.constant 0 : index
    %c0_36 = arith.constant 0 : index
    %63 = vector.load %arg5[%c0_35, %c0_36] : memref<16x512xf32, #tpu.memory_space<vmem>>, vector<16x512xf32>
    tpu.vector_store %arg5[%c0_35, %c0_36], %62 {strides = array<i32>} : memref<16x512xf32, #tpu.memory_space<vmem>>, vector<16x512xf32>,
    %c0_37 = arith.constant 0 : index
    %c5 = arith.constant 5 : index
    %c0_38 = arith.constant 0 : index
    %64 = vector.load %arg2[%c0_37, %c5, %c0_38] : memref<1x8x512xf32, #tpu.memory_space<vmem>>, vector<1x1x512xf32>
    %65 = vector.shape_cast %64 : vector<1x1x512xf32> to vector<1x512xf32>
    %66 = vector.broadcast %65 : vector<1x512xf32> to vector<16x512xf32>
    %67 = vector.broadcast %3 : vector<16x1xf32> to vector<16x512xf32>
    %68 = arith.subf %66, %67 : vector<16x512xf32>
    %c0_39 = arith.constant 0 : index
    %c0_40 = arith.constant 0 : index
    %69 = vector.load %arg5[%c0_39, %c0_40] : memref<16x512xf32, #tpu.memory_space<vmem>>, vector<16x512xf32>
    %70 = arith.mulf %68, %68 : vector<16x512xf32>
    %cst_41 = arith.constant -5.000000e+01 : f32
    %71 = vector.broadcast %cst_41 : f32 to vector<16x512xf32>
    %72 = arith.mulf %71, %70 : vector<16x512xf32>
    %73 = math.exp %72 : vector<16x512xf32>
    %74 = arith.addf %69, %73 : vector<16x512xf32>
    %c0_42 = arith.constant 0 : index
    %c0_43 = arith.constant 0 : index
    %75 = vector.load %arg5[%c0_42, %c0_43] : memref<16x512xf32, #tpu.memory_space<vmem>>, vector<16x512xf32>
    tpu.vector_store %arg5[%c0_42, %c0_43], %74 {strides = array<i32>} : memref<16x512xf32, #tpu.memory_space<vmem>>, vector<16x512xf32>,
    %c0_44 = arith.constant 0 : index
    %c6 = arith.constant 6 : index
    %c0_45 = arith.constant 0 : index
    %76 = vector.load %arg2[%c0_44, %c6, %c0_45] : memref<1x8x512xf32, #tpu.memory_space<vmem>>, vector<1x1x512xf32>
    %77 = vector.shape_cast %76 : vector<1x1x512xf32> to vector<1x512xf32>
    %78 = vector.broadcast %77 : vector<1x512xf32> to vector<16x512xf32>
    %79 = vector.broadcast %3 : vector<16x1xf32> to vector<16x512xf32>
    %80 = arith.subf %78, %79 : vector<16x512xf32>
    %c0_46 = arith.constant 0 : index
    %c0_47 = arith.constant 0 : index
    %81 = vector.load %arg5[%c0_46, %c0_47] : memref<16x512xf32, #tpu.memory_space<vmem>>, vector<16x512xf32>
    %82 = arith.mulf %80, %80 : vector<16x512xf32>
    %cst_48 = arith.constant -5.000000e+01 : f32
    %83 = vector.broadcast %cst_48 : f32 to vector<16x512xf32>
    %84 = arith.mulf %83, %82 : vector<16x512xf32>
    %85 = math.exp %84 : vector<16x512xf32>
    %86 = arith.addf %81, %85 : vector<16x512xf32>
    %c0_49 = arith.constant 0 : index
    %c0_50 = arith.constant 0 : index
    %87 = vector.load %arg5[%c0_49, %c0_50] : memref<16x512xf32, #tpu.memory_space<vmem>>, vector<16x512xf32>
    tpu.vector_store %arg5[%c0_49, %c0_50], %86 {strides = array<i32>} : memref<16x512xf32, #tpu.memory_space<vmem>>, vector<16x512xf32>,
    %c0_51 = arith.constant 0 : index
    %c7 = arith.constant 7 : index
    %c0_52 = arith.constant 0 : index
    %88 = vector.load %arg2[%c0_51, %c7, %c0_52] : memref<1x8x512xf32, #tpu.memory_space<vmem>>, vector<1x1x512xf32>
    %89 = vector.shape_cast %88 : vector<1x1x512xf32> to vector<1x512xf32>
    %90 = vector.broadcast %89 : vector<1x512xf32> to vector<16x512xf32>
    %91 = vector.broadcast %3 : vector<16x1xf32> to vector<16x512xf32>
    %92 = arith.subf %90, %91 : vector<16x512xf32>
    %c0_53 = arith.constant 0 : index
    %c0_54 = arith.constant 0 : index
    %93 = vector.load %arg5[%c0_53, %c0_54] : memref<16x512xf32, #tpu.memory_space<vmem>>, vector<16x512xf32>
    %94 = arith.mulf %92, %92 : vector<16x512xf32>
    %cst_55 = arith.constant -5.000000e+01 : f32
    %95 = vector.broadcast %cst_55 : f32 to vector<16x512xf32>
    %96 = arith.mulf %95, %94 : vector<16x512xf32>
    %97 = math.exp %96 : vector<16x512xf32>
    %98 = arith.addf %93, %97 : vector<16x512xf32>
    %c0_56 = arith.constant 0 : index
    %c0_57 = arith.constant 0 : index
    %99 = vector.load %arg5[%c0_56, %c0_57] : memref<16x512xf32, #tpu.memory_space<vmem>>, vector<16x512xf32>
    tpu.vector_store %arg5[%c0_56, %c0_57], %98 {strides = array<i32>} : memref<16x512xf32, #tpu.memory_space<vmem>>, vector<16x512xf32>,
    %c1_i32 = arith.constant 1 : i32
    %100 = arith.cmpi eq, %arg1, %c1_i32 : i32
    %101 = arith.extui %100 : i1 to i32
    %c0_i32_58 = arith.constant 0 : i32
    %102 = arith.cmpi ne, %101, %c0_i32_58 : i32
    scf.if %102 {
      %c0_59 = arith.constant 0 : index
      %c0_60 = arith.constant 0 : index
      %103 = vector.load %arg5[%c0_59, %c0_60] : memref<16x512xf32, #tpu.memory_space<vmem>>, vector<16x512xf32>
      %cst_61 = arith.constant dense<0.000000e+00> : vector<16xf32>
      %104 = vector.multi_reduction <add>, %103, %cst_61 [1] : vector<16x512xf32> to vector<16xf32>
      %105 = vector.shape_cast %104 : vector<16xf32> to vector<16x1xf32>
      %cst_62 = arith.constant 0.249338925 : f32
      %106 = vector.broadcast %cst_62 : f32 to vector<16x1xf32>
      %107 = arith.mulf %106, %105 : vector<16x1xf32>
      %c0_63 = arith.constant 0 : index
      %c0_64 = arith.constant 0 : index
      %c0_65 = arith.constant 0 : index
      %108 = vector.load %arg4[%c0_63, %c0_64, %c0_65] : memref<1x16x1xf32, #tpu.memory_space<vmem>>, vector<1x16x1xf32>
      %109 = vector.shape_cast %108 : vector<1x16x1xf32> to vector<16x1xf32>
      %110 = vector.shape_cast %107 : vector<16x1xf32> to vector<1x16x1xf32>
      tpu.vector_store %arg4[%c0_63, %c0_64, %c0_65], %110 {strides = array<i32>} : memref<1x16x1xf32, #tpu.memory_space<vmem>>, vector<1x16x1xf32>,
    } else {
    }
    return
  }
  func.func @transform_0(%arg0: i32, %arg1: i32) -> (i32, i32, i32) {
    %c0_i32 = arith.constant 0 : i32
    %c0_i32_0 = arith.constant 0 : i32
    return %arg0, %arg1, %c0_i32 : i32, i32, i32
  }
  func.func @transform_1(%arg0: i32, %arg1: i32) -> (i32, i32) {
    %c0_i32 = arith.constant 0 : i32
    %c0_i32_0 = arith.constant 0 : i32
    %c0_i32_1 = arith.constant 0 : i32
    return %c0_i32, %c0_i32_0 : i32, i32
  }
  func.func @transform_2(%arg0: i32, %arg1: i32) -> (i32, i32, i32) {
    %c0_i32 = arith.constant 0 : i32
    %c0_i32_0 = arith.constant 0 : i32
    %c0_i32_1 = arith.constant 0 : i32
    return %arg0, %c0_i32, %c0_i32_0 : i32, i32, i32
  }
}

</mosaic_0001>

<llo_original>
// kernel: tpu_custom_call.1
$region0: #{tpu_custom_call.1}
  #allocation0 [shape = 'u32[]', space=smem, size = 0x4, offset = 0x4, fixed_abs, tag = 'smem constant byte address 0x4 - core index']
  #allocation1 [shape = 'u32[144,128]{1,0:T(1,128)}', space=vmem, size = 0x12000, scoped, tag = 'internal scratch']
  #allocation2 [shape = 'f32[16,512]{1,0:T(8,128)}', space=vmem, size = 0x8000, scoped, tag = 'scratch operand']
  %s0 = inlined_call_operand.hbm [shape: f32[2,16,512], index: 0, kind: input, shape index: {}]
  %s1 = inlined_call_operand.vmem [shape: f32[16,1], index: 1, kind: input, shape index: {}]
  %s2 = inlined_call_operand.vmem [shape: f32[2,16,1], index: 2, kind: output, shape index: {}]
  %s3 = sld [smem:[#allocation0]]
  $region53: #{tpu_custom_call.1} parent=0
    _
  %s5 = ssub.s32 1, %s3
  %s6 = scalar_select 0, %s5, %s3
  $region1: #{tpu_custom_call.1} parent=0
    #allocation3 [shape = 'u8[32768]{0}', space=vmem, size = 0x8000, scoped, tag = 'input window, operand 0']
    #allocation4 [shape = 's32[2]{0}', space=sflag, size = 0x8, scoped, tag = 'scoped memory for tpu_custom_call.1']
    %7 = vsyncpa [#allocation4], 0
    %s8 = scalar_lea.sflag [#allocation4], 1
    %9 = vsyncpa %s8, 0
    loop: start=0, step=1, limit=6
    $region2: #{tpu_custom_call.1} parent=1 // loop_pre_header
      _
    $region3: #{tpu_custom_call.1} parent=1 // loop_header
      %s11 = sphi 0, %s15
      %p12 = scmp.ge.s32.totalorder %s11, 6
      %s18 = sphi 0, %s30
      %s19 = sphi 0, %s26
      %s20 = sphi 0, %s18
      %s21 = sphi 0, %s19
      %s22 = sphi 0, %s20
      %s23 = sphi 0, %s21
      %s35 = sphi 0, %s37
      %s38 = sphi 0, %s35
      %s39 = sphi 0, %s38
      %s55 = sphi 0, %s39
      %s59 = sphi 0, %s59
      %s61 = sphi 0, %s59
      %s62 = sphi 0, %s61
      %s76 = sphi 0, %s62
      %s82 = sphi 0, %s84
      %s85 = sphi 0, %s82
      %s86 = sphi 0, %s85
      %s102 = sphi 0, %s86
    $region4: #{tpu_custom_call.1} parent=1 // loop_header_branch
      %14 = sbr.rel (%p12) target = $region8
    $region5: #{tpu_custom_call.1} parent=1 // loop_body
      %s16 = ssub.s32 %s11, 1
      %s17 = ssub.s32 %s11, 2
      %s24 = sadd.s32 1, %s19
      %p25 = scmp.ge.s32.totalorder %s24, 2
      %s26 = scalar_select %p25, 0, %s24
      %s27 = sadd.s32 1, %s18
      %s28 = scalar_select %p25, %s27, %s18
      %p29 = scmp.ge.s32.totalorder %s28, 2
      %s30 = scalar_select %p29, 0, %s28
      %s31 = ssub.s32 %s18, %s30
      %s32 = ssub.s32 %s19, %s26
      %s33 = sor.u32 %s31, %s32
      %p34 = scmp.eq.s32.totalorder %s33, 0
      %s36 = sadd.s32 %s35, 1
      %s37 = scalar_select %p34, %s35, %s36
      %p40 = pneg %p34
      %p41 = scmp.eq.s32.totalorder %s11, 3
      %p42 = por %p40, %p41
      %p43 = scmp.ne.s32.totalorder %s35, %s38
      %p44 = scmp.eq.s32.totalorder %s11, 0
      %p45 = por %p43, %p44
      %p46 = scmp.ne.s32.totalorder %s35, %s38
      %p47 = scmp.eq.s32.totalorder %s16, 3
      %p48 = por %p46, %p47
      %p49 = scmp.ne.s32.totalorder %s38, %s39
      %p50 = scmp.eq.s32.totalorder %s16, 0
      %p51 = por %p49, %p50
      %p52 = scmp.ne.s32.totalorder %s38, %s39
      %p53 = scmp.eq.s32.totalorder %s17, 3
      %p54 = por %p52, %p53
      %p56 = scmp.ne.s32.totalorder %s39, %s55
      %p57 = scmp.eq.s32.totalorder %s17, 0
      %p58 = por %p56, %p57
      %s60 = sadd.s32 %s59, 1
      %p63 = scmp.eq.s32.totalorder %s11, 3
      %p64 = scmp.ne.s32.totalorder %s59, %s61
      %p65 = scmp.eq.s32.totalorder %s11, 0
      %p66 = por %p64, %p65
      %p67 = scmp.ne.s32.totalorder %s59, %s61
      %p68 = scmp.eq.s32.totalorder %s16, 3
      %p69 = por %p67, %p68
      %p70 = scmp.ne.s32.totalorder %s61, %s62
      %p71 = scmp.eq.s32.totalorder %s16, 0
      %p72 = por %p70, %p71
      %p73 = scmp.ne.s32.totalorder %s61, %s62
      %p74 = scmp.eq.s32.totalorder %s17, 3
      %p75 = por %p73, %p74
      %p77 = scmp.ne.s32.totalorder %s62, %s76
      %p78 = scmp.eq.s32.totalorder %s17, 0
      %p79 = por %p77, %p78
      %s80 = ssub.s32 %s18, %s30
      %p81 = scmp.eq.s32.totalorder %s80, 0
      %s83 = sadd.s32 %s82, 1
      %s84 = scalar_select %p81, %s82, %s83
      %p87 = pneg %p81
      %p88 = scmp.eq.s32.totalorder %s11, 3
      %p89 = por %p87, %p88
      %p90 = scmp.ne.s32.totalorder %s82, %s85
      %p91 = scmp.eq.s32.totalorder %s11, 0
      %p92 = por %p90, %p91
      %p93 = scmp.ne.s32.totalorder %s82, %s85
      %p94 = scmp.eq.s32.totalorder %s16, 3
      %p95 = por %p93, %p94
      %p96 = scmp.ne.s32.totalorder %s85, %s86
      %p97 = scmp.eq.s32.totalorder %s16, 0
      %p98 = por %p96, %p97
      %p99 = scmp.ne.s32.totalorder %s85, %s86
      %p100 = scmp.eq.s32.totalorder %s17, 3
      %p101 = por %p99, %p100
      %p103 = scmp.ne.s32.totalorder %s86, %s102
      %p104 = scmp.eq.s32.totalorder %s17, 0
      %p105 = por %p103, %p104
      %p106 = scmp.le.s32.totalorder 1, %s11
      %p107 = scmp.lt.s32.totalorder %s11, 5
      %p108 = pnand %p106, %p107
      %p109 = pneg %p108
      // Predicated region
      $region9: #{tpu_custom_call.1} parent=5 // pred_check
        _
      $region10: #{tpu_custom_call.1} parent=5 // pred_check_branch
        %111 = sbr.rel (%p108) target = $region12
      $region11: #{tpu_custom_call.1} parent=5 // pred_region
        %s112 = ssub.s32 %s11, 1
        // Predicated region
        $region13: #{tpu_custom_call.1} parent=11 // pred_check
          %p113 = pneg %p72
        $region14: #{tpu_custom_call.1} parent=11 // pred_check_branch
          %115 = sbr.rel (%p113) target = $region16
        $region15: #{tpu_custom_call.1} parent=11 // pred_region
          _
        $region16: #{tpu_custom_call.1} parent=11 // pred_fallthru
          _
      $region12: #{tpu_custom_call.1} parent=5 // pred_fallthru
        _
      %p116 = scmp.lt.s32.totalorder %s11, 4
      // Predicated region
      $region17: #{tpu_custom_call.1} parent=5 // pred_check
        %p117 = pneg %p116
      $region18: #{tpu_custom_call.1} parent=5 // pred_check_branch
        %119 = sbr.rel (%p117) target = $region20
      $region19: #{tpu_custom_call.1} parent=5 // pred_region
        // Predicated region
        $region21: #{tpu_custom_call.1} parent=19 // pred_check
          %p120 = pneg %p45
        $region22: #{tpu_custom_call.1} parent=19 // pred_check_branch
          %122 = sbr.rel (%p120) target = $region24
        $region23: #{tpu_custom_call.1} parent=19 // pred_region
          %s123 = sand.u32 %s35, 1
          %s124 = scalar_lea.sflag [#allocation4], %s123
          %s125 = sand.u32 %s35, 1
          %s126 = smul.addr %s125, 32
          %s127 = scalar_lea.vmem [#allocation3], %s126
          %s129 = ssub.s32 512, 512
          %130 = vsyncadd %s124, %s129
          %s131 = smul.addr %s19, 4
          %s132 = smul.addr %s18, 8
          %s133 = sadd.s32 %s131, %s132
          %s134 = smul.addr %s133, 128
          %s135 = scalar_lea.hbm %s0, %s134
          %s137 = sshll.u32 %s127, 4
          %s138 = int_to_ptr.vmem [resolvable:$true] %s137
          %140 = dma.hbm_to_vmem [thread:$0]  %s135, 512, %s138, %s124
        $region24: #{tpu_custom_call.1} parent=19 // pred_fallthru
          _
      $region20: #{tpu_custom_call.1} parent=5 // pred_fallthru
        _
      %p141 = scmp.le.s32.totalorder 1, %s11
      %p142 = scmp.lt.s32.totalorder %s11, 5
      %p143 = pnand %p141, %p142
      %p144 = pneg %p143
      // Predicated region
      $region25: #{tpu_custom_call.1} parent=5 // pred_check
        _
      $region26: #{tpu_custom_call.1} parent=5 // pred_check_branch
        %146 = sbr.rel (%p143) target = $region28
      $region27: #{tpu_custom_call.1} parent=5 // pred_region
        %s147 = ssub.s32 %s11, 1
        %s148 = sand.u32 %s38, 1
        %s149 = scalar_lea.sflag [#allocation4], %s148
        %s150 = sand.u32 %s38, 1
        %s151 = smul.addr %s150, 32
        %s152 = scalar_lea.vmem [#allocation3], %s151
        // Predicated region
        $region29: #{tpu_custom_call.1} parent=27 // pred_check
          %p153 = pneg %p51
        $region30: #{tpu_custom_call.1} parent=27 // pred_check_branch
          %155 = sbr.rel (%p153) target = $region32
        $region31: #{tpu_custom_call.1} parent=27 // pred_region
          %156 = dma.done %s149, 512
        $region32: #{tpu_custom_call.1} parent=27 // pred_fallthru
          _
        %s157 = sand.u32 %s38, 1
        %s158 = scalar_lea.sflag [#allocation4], %s157
        %s159 = sand.u32 %s38, 1
        %s160 = smul.addr %s159, 32
        %s161 = scalar_lea.vmem [#allocation3], %s160
        %p162 = pneg %p51
        %p163 = pneg %p48
        %p164 = pneg %p72
        %p165 = pneg %p69
        %p166 = pneg %p98
        %p167 = pneg %p95
        %p168 = scmp.lt.s32.totalorder %s20, 1
        %s169 = scalar_select %p168, %s20, 1
        %s170 = smul.addr %s169, 2
        %s171 = smul.addr %s170, 8
        %s172 = scalar_lea.vmem %s2, %s171
        %p173 = scmp.lt.s32.totalorder %s20, 1
        %s174 = scalar_select %p173, %s20, 1
        %s175 = smul.addr %s174, 2
        %s176 = smul.addr %s175, 8
        %s177 = scalar_lea.vmem %s2, %s176
        %p178 = scmp.eq.s32.totalorder %s21, 0
        // Predicated region
        $region33: #{tpu_custom_call.1} parent=27 // pred_check
          %p179 = pneg %p178
        $region34: #{tpu_custom_call.1} parent=27 // pred_check_branch
          %181 = sbr.rel (%p179) target = $region36
        $region35: #{tpu_custom_call.1} parent=27 // pred_region
          %182 = vst [vmem:[#allocation2] sm:$0xff] 0.0
          %183 = vst [vmem:[#allocation2 + $0x8] sm:$0xff] 0.0
          %184 = vst [vmem:[#allocation2 + $0x10] sm:$0xff] 0.0
          %185 = vst [vmem:[#allocation2 + $0x18] sm:$0xff] 0.0
          %186 = vst [vmem:[#allocation2 + $0x20] sm:$0xff] 0.0
          %187 = vst [vmem:[#allocation2 + $0x28] sm:$0xff] 0.0
          %188 = vst [vmem:[#allocation2 + $0x30] sm:$0xff] 0.0
          %189 = vst [vmem:[#allocation2 + $0x38] sm:$0xff] 0.0
        $region36: #{tpu_custom_call.1} parent=27 // pred_fallthru
          _
        %v190 = vld [vmem:[%s1] sm:$0xff]
        %v191 = vld [vmem:[%s1 + $0x8] sm:$0xff]
        %v192 = vld [vmem:[%s152] ss:$8 sm:$0xf]
        %v194 = vlaneseq
        %v195 = vshrl.u32 %v194, 7
        %v196 = vsub.s32 0, %v195
        %v197 = vrot.slane %v192, %v196
        %v198 = vlaneseq
        %v199 = vshrl.u32 %v198, 7
        %v200 = vsub.s32 1, %v199
        %v201 = vrot.slane %v192, %v200
        %v202 = vlaneseq
        %v203 = vshrl.u32 %v202, 7
        %v204 = vsub.s32 2, %v203
        %v205 = vrot.slane %v192, %v204
        %v206 = vlaneseq
        %v207 = vshrl.u32 %v206, 7
        %v208 = vsub.s32 3, %v207
        %v209 = vrot.slane %v192, %v208
        %215 = vset.pattern.permute.xlu0 0
        %216 = vperm.xlu0 %215, %v190
        %v217 = vpop.permute.xlu0 %216
        %220 = vset.pattern.permute.xlu0 0
        %221 = vperm.xlu0 %220, %v191
        %v222 = vpop.permute.xlu0 %221
        %v224 = vsub.f32 %v197, %v217
        %v225 = vsub.f32 %v201, %v217
        %v226 = vsub.f32 %v205, %v217
        %v227 = vsub.f32 %v209, %v217
        %v228 = vsub.f32 %v197, %v222
        %v229 = vsub.f32 %v201, %v222
        %v230 = vsub.f32 %v205, %v222
        %v231 = vsub.f32 %v209, %v222
        %v232 = vld [vmem:[#allocation2] sm:$0xff]
        %v233 = vld [vmem:[#allocation2 + $0x8] sm:$0xff]
        %v234 = vld [vmem:[#allocation2 + $0x10] sm:$0xff]
        %v235 = vld [vmem:[#allocation2 + $0x18] sm:$0xff]
        %v236 = vld [vmem:[#allocation2 + $0x20] sm:$0xff]
        %v237 = vld [vmem:[#allocation2 + $0x28] sm:$0xff]
        %v238 = vld [vmem:[#allocation2 + $0x30] sm:$0xff]
        %v239 = vld [vmem:[#allocation2 + $0x38] sm:$0xff]
        %v240 = vmul.f32 %v224, %v224
        %v241 = vmul.f32 %v225, %v225
        %v242 = vmul.f32 %v226, %v226
        %v243 = vmul.f32 %v227, %v227
        %v244 = vmul.f32 %v228, %v228
        %v245 = vmul.f32 %v229, %v229
        %v246 = vmul.f32 %v230, %v230
        %v247 = vmul.f32 %v231, %v231
        %v248 = vmul.f32 %v240, -50.0
        %v249 = vmul.f32 %v241, -50.0
        %v250 = vmul.f32 %v242, -50.0
        %v251 = vmul.f32 %v243, -50.0
        %v252 = vmul.f32 %v244, -50.0
        %v253 = vmul.f32 %v245, -50.0
        %v254 = vmul.f32 %v246, -50.0
        %v255 = vmul.f32 %v247, -50.0
        %v256 = vmul.f32 %v248, 1.442695
        %v257 = vpow.pop %v256
        %v258 = vmul.f32 %v249, 1.442695
        %v259 = vpow.pop %v258
        %v260 = vmul.f32 %v250, 1.442695
        %v261 = vpow.pop %v260
        %v262 = vmul.f32 %v251, 1.442695
        %v263 = vpow.pop %v262
        %v264 = vmul.f32 %v252, 1.442695
        %v265 = vpow.pop %v264
        %v266 = vmul.f32 %v253, 1.442695
        %v267 = vpow.pop %v266
        %v268 = vmul.f32 %v254, 1.442695
        %v269 = vpow.pop %v268
        %v270 = vmul.f32 %v255, 1.442695
        %v271 = vpow.pop %v270
        %v272 = vadd.f32 %v232, %v257
        %v273 = vadd.f32 %v233, %v259
        %v274 = vadd.f32 %v234, %v261
        %v275 = vadd.f32 %v235, %v263
        %v276 = vadd.f32 %v236, %v265
        %v277 = vadd.f32 %v237, %v267
        %v278 = vadd.f32 %v238, %v269
        %v279 = vadd.f32 %v239, %v271
        %280 = vst [vmem:[#allocation2] sm:$0xff] %v272
        %281 = vst [vmem:[#allocation2 + $0x8] sm:$0xff] %v273
        %282 = vst [vmem:[#allocation2 + $0x10] sm:$0xff] %v274
        %283 = vst [vmem:[#allocation2 + $0x18] sm:$0xff] %v275
        %284 = vst [vmem:[#allocation2 + $0x20] sm:$0xff] %v276
        %285 = vst [vmem:[#allocation2 + $0x28] sm:$0xff] %v277
        %286 = vst [vmem:[#allocation2 + $0x30] sm:$0xff] %v278
        %287 = vst [vmem:[#allocation2 + $0x38] sm:$0xff] %v279
        %s288 = scalar_lea.vmem %s152, 1 [#allocation3]
        %v289 = vld [vmem:[%s288] ss:$8 sm:$0xf]
        %v291 = vlaneseq
        %v292 = vshrl.u32 %v291, 7
        %v293 = vsub.s32 0, %v292
        %v294 = vrot.slane %v289, %v293
        %v295 = vlaneseq
        %v296 = vshrl.u32 %v295, 7
        %v297 = vsub.s32 1, %v296
        %v298 = vrot.slane %v289, %v297
        %v299 = vlaneseq
        %v300 = vshrl.u32 %v299, 7
        %v301 = vsub.s32 2, %v300
        %v302 = vrot.slane %v289, %v301
        %v303 = vlaneseq
        %v304 = vshrl.u32 %v303, 7
        %v305 = vsub.s32 3, %v304
        %v306 = vrot.slane %v289, %v305
        %v311 = vsub.f32 %v294, %v217
        %v312 = vsub.f32 %v298, %v217
        %v313 = vsub.f32 %v302, %v217
        %v314 = vsub.f32 %v306, %v217
        %v315 = vsub.f32 %v294, %v222
        %v316 = vsub.f32 %v298, %v222
        %v317 = vsub.f32 %v302, %v222
        %v318 = vsub.f32 %v306, %v222
        %v319 = vld [vmem:[#allocation2] sm:$0xff]
        %v320 = vld [vmem:[#allocation2 + $0x8] sm:$0xff]
        %v321 = vld [vmem:[#allocation2 + $0x10] sm:$0xff]
        %v322 = vld [vmem:[#allocation2 + $0x18] sm:$0xff]
        %v323 = vld [vmem:[#allocation2 + $0x20] sm:$0xff]
        %v324 = vld [vmem:[#allocation2 + $0x28] sm:$0xff]
        %v325 = vld [vmem:[#allocation2 + $0x30] sm:$0xff]
        %v326 = vld [vmem:[#allocation2 + $0x38] sm:$0xff]
        %v327 = vmul.f32 %v311, %v311
        %v328 = vmul.f32 %v312, %v312
        %v329 = vmul.f32 %v313, %v313
        %v330 = vmul.f32 %v314, %v314
        %v331 = vmul.f32 %v315, %v315
        %v332 = vmul.f32 %v316, %v316
        %v333 = vmul.f32 %v317, %v317
        %v334 = vmul.f32 %v318, %v318
        %v335 = vmul.f32 %v327, -50.0
        %v336 = vmul.f32 %v328, -50.0
        %v337 = vmul.f32 %v329, -50.0
        %v338 = vmul.f32 %v330, -50.0
        %v339 = vmul.f32 %v331, -50.0
        %v340 = vmul.f32 %v332, -50.0
        %v341 = vmul.f32 %v333, -50.0
        %v342 = vmul.f32 %v334, -50.0
        %v343 = vmul.f32 %v335, 1.442695
        %v344 = vpow.pop %v343
        %v345 = vmul.f32 %v336, 1.442695
        %v346 = vpow.pop %v345
        %v347 = vmul.f32 %v337, 1.442695
        %v348 = vpow.pop %v347
        %v349 = vmul.f32 %v338, 1.442695
        %v350 = vpow.pop %v349
        %v351 = vmul.f32 %v339, 1.442695
        %v352 = vpow.pop %v351
        %v353 = vmul.f32 %v340, 1.442695
        %v354 = vpow.pop %v353
        %v355 = vmul.f32 %v341, 1.442695
        %v356 = vpow.pop %v355
        %v357 = vmul.f32 %v342, 1.442695
        %v358 = vpow.pop %v357
        %v359 = vadd.f32 %v319, %v344
        %v360 = vadd.f32 %v320, %v346
        %v361 = vadd.f32 %v321, %v348
        %v362 = vadd.f32 %v322, %v350
        %v363 = vadd.f32 %v323, %v352
        %v364 = vadd.f32 %v324, %v354
        %v365 = vadd.f32 %v325, %v356
        %v366 = vadd.f32 %v326, %v358
        %367 = vst [vmem:[#allocation2] sm:$0xff] %v359
        %368 = vst [vmem:[#allocation2 + $0x8] sm:$0xff] %v360
        %369 = vst [vmem:[#allocation2 + $0x10] sm:$0xff] %v361
        %370 = vst [vmem:[#allocation2 + $0x18] sm:$0xff] %v362
        %371 = vst [vmem:[#allocation2 + $0x20] sm:$0xff] %v363
        %372 = vst [vmem:[#allocation2 + $0x28] sm:$0xff] %v364
        %373 = vst [vmem:[#allocation2 + $0x30] sm:$0xff] %v365
        %374 = vst [vmem:[#allocation2 + $0x38] sm:$0xff] %v366
        %s375 = scalar_lea.vmem %s152, 2 [#allocation3]
        %v376 = vld [vmem:[%s375] ss:$8 sm:$0xf]
        %v378 = vlaneseq
        %v379 = vshrl.u32 %v378, 7
        %v380 = vsub.s32 0, %v379
        %v381 = vrot.slane %v376, %v380
        %v382 = vlaneseq
        %v383 = vshrl.u32 %v382, 7
        %v384 = vsub.s32 1, %v383
        %v385 = vrot.slane %v376, %v384
        %v386 = vlaneseq
        %v387 = vshrl.u32 %v386, 7
        %v388 = vsub.s32 2, %v387
        %v389 = vrot.slane %v376, %v388
        %v390 = vlaneseq
        %v391 = vshrl.u32 %v390, 7
        %v392 = vsub.s32 3, %v391
        %v393 = vrot.slane %v376, %v392
        %v398 = vsub.f32 %v381, %v217
        %v399 = vsub.f32 %v385, %v217
        %v400 = vsub.f32 %v389, %v217
        %v401 = vsub.f32 %v393, %v217
        %v402 = vsub.f32 %v381, %v222
        %v403 = vsub.f32 %v385, %v222
        %v404 = vsub.f32 %v389, %v222
        %v405 = vsub.f32 %v393, %v222
        %v406 = vld [vmem:[#allocation2] sm:$0xff]
        %v407 = vld [vmem:[#allocation2 + $0x8] sm:$0xff]
        %v408 = vld [vmem:[#allocation2 + $0x10] sm:$0xff]
        %v409 = vld [vmem:[#allocation2 + $0x18] sm:$0xff]
        %v410 = vld [vmem:[#allocation2 + $0x20] sm:$0xff]
        %v411 = vld [vmem:[#allocation2 + $0x28] sm:$0xff]
        %v412 = vld [vmem:[#allocation2 + $0x30] sm:$0xff]
        %v413 = vld [vmem:[#allocation2 + $0x38] sm:$0xff]
        %v414 = vmul.f32 %v398, %v398
        %v415 = vmul.f32 %v399, %v399
        %v416 = vmul.f32 %v400, %v400
        %v417 = vmul.f32 %v401, %v401
        %v418 = vmul.f32 %v402, %v402
        %v419 = vmul.f32 %v403, %v403
        %v420 = vmul.f32 %v404, %v404
        %v421 = vmul.f32 %v405, %v405
        %v422 = vmul.f32 %v414, -50.0
        %v423 = vmul.f32 %v415, -50.0
        %v424 = vmul.f32 %v416, -50.0
        %v425 = vmul.f32 %v417, -50.0
        %v426 = vmul.f32 %v418, -50.0
        %v427 = vmul.f32 %v419, -50.0
        %v428 = vmul.f32 %v420, -50.0
        %v429 = vmul.f32 %v421, -50.0
        %v430 = vmul.f32 %v422, 1.442695
        %v431 = vpow.pop %v430
        %v432 = vmul.f32 %v423, 1.442695
        %v433 = vpow.pop %v432
        %v434 = vmul.f32 %v424, 1.442695
        %v435 = vpow.pop %v434
        %v436 = vmul.f32 %v425, 1.442695
        %v437 = vpow.pop %v436
        %v438 = vmul.f32 %v426, 1.442695
        %v439 = vpow.pop %v438
        %v440 = vmul.f32 %v427, 1.442695
        %v441 = vpow.pop %v440
        %v442 = vmul.f32 %v428, 1.442695
        %v443 = vpow.pop %v442
        %v444 = vmul.f32 %v429, 1.442695
        %v445 = vpow.pop %v444
        %v446 = vadd.f32 %v406, %v431
        %v447 = vadd.f32 %v407, %v433
        %v448 = vadd.f32 %v408, %v435
        %v449 = vadd.f32 %v409, %v437
        %v450 = vadd.f32 %v410, %v439
        %v451 = vadd.f32 %v411, %v441
        %v452 = vadd.f32 %v412, %v443
        %v453 = vadd.f32 %v413, %v445
        %454 = vst [vmem:[#allocation2] sm:$0xff] %v446
        %455 = vst [vmem:[#allocation2 + $0x8] sm:$0xff] %v447
        %456 = vst [vmem:[#allocation2 + $0x10] sm:$0xff] %v448
        %457 = vst [vmem:[#allocation2 + $0x18] sm:$0xff] %v449
        %458 = vst [vmem:[#allocation2 + $0x20] sm:$0xff] %v450
        %459 = vst [vmem:[#allocation2 + $0x28] sm:$0xff] %v451
        %460 = vst [vmem:[#allocation2 + $0x30] sm:$0xff] %v452
        %461 = vst [vmem:[#allocation2 + $0x38] sm:$0xff] %v453
        %s462 = scalar_lea.vmem %s152, 3 [#allocation3]
        %v463 = vld [vmem:[%s462] ss:$8 sm:$0xf]
        %v465 = vlaneseq
        %v466 = vshrl.u32 %v465, 7
        %v467 = vsub.s32 0, %v466
        %v468 = vrot.slane %v463, %v467
        %v469 = vlaneseq
        %v470 = vshrl.u32 %v469, 7
        %v471 = vsub.s32 1, %v470
        %v472 = vrot.slane %v463, %v471
        %v473 = vlaneseq
        %v474 = vshrl.u32 %v473, 7
        %v475 = vsub.s32 2, %v474
        %v476 = vrot.slane %v463, %v475
        %v477 = vlaneseq
        %v478 = vshrl.u32 %v477, 7
        %v479 = vsub.s32 3, %v478
        %v480 = vrot.slane %v463, %v479
        %v485 = vsub.f32 %v468, %v217
        %v486 = vsub.f32 %v472, %v217
        %v487 = vsub.f32 %v476, %v217
        %v488 = vsub.f32 %v480, %v217
        %v489 = vsub.f32 %v468, %v222
        %v490 = vsub.f32 %v472, %v222
        %v491 = vsub.f32 %v476, %v222
        %v492 = vsub.f32 %v480, %v222
        %v493 = vld [vmem:[#allocation2] sm:$0xff]
        %v494 = vld [vmem:[#allocation2 + $0x8] sm:$0xff]
        %v495 = vld [vmem:[#allocation2 + $0x10] sm:$0xff]
        %v496 = vld [vmem:[#allocation2 + $0x18] sm:$0xff]
        %v497 = vld [vmem:[#allocation2 + $0x20] sm:$0xff]
        %v498 = vld [vmem:[#allocation2 + $0x28] sm:$0xff]
        %v499 = vld [vmem:[#allocation2 + $0x30] sm:$0xff]
        %v500 = vld [vmem:[#allocation2 + $0x38] sm:$0xff]
        %v501 = vmul.f32 %v485, %v485
        %v502 = vmul.f32 %v486, %v486
        %v503 = vmul.f32 %v487, %v487
        %v504 = vmul.f32 %v488, %v488
        %v505 = vmul.f32 %v489, %v489
        %v506 = vmul.f32 %v490, %v490
        %v507 = vmul.f32 %v491, %v491
        %v508 = vmul.f32 %v492, %v492
        %v509 = vmul.f32 %v501, -50.0
        %v510 = vmul.f32 %v502, -50.0
        %v511 = vmul.f32 %v503, -50.0
        %v512 = vmul.f32 %v504, -50.0
        %v513 = vmul.f32 %v505, -50.0
        %v514 = vmul.f32 %v506, -50.0
        %v515 = vmul.f32 %v507, -50.0
        %v516 = vmul.f32 %v508, -50.0
        %v517 = vmul.f32 %v509, 1.442695
        %v518 = vpow.pop %v517
        %v519 = vmul.f32 %v510, 1.442695
        %v520 = vpow.pop %v519
        %v521 = vmul.f32 %v511, 1.442695
        %v522 = vpow.pop %v521
        %v523 = vmul.f32 %v512, 1.442695
        %v524 = vpow.pop %v523
        %v525 = vmul.f32 %v513, 1.442695
        %v526 = vpow.pop %v525
        %v527 = vmul.f32 %v514, 1.442695
        %v528 = vpow.pop %v527
        %v529 = vmul.f32 %v515, 1.442695
        %v530 = vpow.pop %v529
        %v531 = vmul.f32 %v516, 1.442695
        %v532 = vpow.pop %v531
        %v533 = vadd.f32 %v493, %v518
        %v534 = vadd.f32 %v494, %v520
        %v535 = vadd.f32 %v495, %v522
        %v536 = vadd.f32 %v496, %v524
        %v537 = vadd.f32 %v497, %v526
        %v538 = vadd.f32 %v498, %v528
        %v539 = vadd.f32 %v499, %v530
        %v540 = vadd.f32 %v500, %v532
        %541 = vst [vmem:[#allocation2] sm:$0xff] %v533
        %542 = vst [vmem:[#allocation2 + $0x8] sm:$0xff] %v534
        %543 = vst [vmem:[#allocation2 + $0x10] sm:$0xff] %v535
        %544 = vst [vmem:[#allocation2 + $0x18] sm:$0xff] %v536
        %545 = vst [vmem:[#allocation2 + $0x20] sm:$0xff] %v537
        %546 = vst [vmem:[#allocation2 + $0x28] sm:$0xff] %v538
        %547 = vst [vmem:[#allocation2 + $0x30] sm:$0xff] %v539
        %548 = vst [vmem:[#allocation2 + $0x38] sm:$0xff] %v540
        %s549 = scalar_lea.vmem %s152, 4 [#allocation3]
        %v550 = vld [vmem:[%s549] ss:$8 sm:$0xf]
        %v552 = vlaneseq
        %v553 = vshrl.u32 %v552, 7
        %v554 = vsub.s32 0, %v553
        %v555 = vrot.slane %v550, %v554
        %v556 = vlaneseq
        %v557 = vshrl.u32 %v556, 7
        %v558 = vsub.s32 1, %v557
        %v559 = vrot.slane %v550, %v558
        %v560 = vlaneseq
        %v561 = vshrl.u32 %v560, 7
        %v562 = vsub.s32 2, %v561
        %v563 = vrot.slane %v550, %v562
        %v564 = vlaneseq
        %v565 = vshrl.u32 %v564, 7
        %v566 = vsub.s32 3, %v565
        %v567 = vrot.slane %v550, %v566
        %v572 = vsub.f32 %v555, %v217
        %v573 = vsub.f32 %v559, %v217
        %v574 = vsub.f32 %v563, %v217
        %v575 = vsub.f32 %v567, %v217
        %v576 = vsub.f32 %v555, %v222
        %v577 = vsub.f32 %v559, %v222
        %v578 = vsub.f32 %v563, %v222
        %v579 = vsub.f32 %v567, %v222
        %v580 = vld [vmem:[#allocation2] sm:$0xff]
        %v581 = vld [vmem:[#allocation2 + $0x8] sm:$0xff]
        %v582 = vld [vmem:[#allocation2 + $0x10] sm:$0xff]
        %v583 = vld [vmem:[#allocation2 + $0x18] sm:$0xff]
        %v584 = vld [vmem:[#allocation2 + $0x20] sm:$0xff]
        %v585 = vld [vmem:[#allocation2 + $0x28] sm:$0xff]
        %v586 = vld [vmem:[#allocation2 + $0x30] sm:$0xff]
        %v587 = vld [vmem:[#allocation2 + $0x38] sm:$0xff]
        %v588 = vmul.f32 %v572, %v572
        %v589 = vmul.f32 %v573, %v573
        %v590 = vmul.f32 %v574, %v574
        %v591 = vmul.f32 %v575, %v575
        %v592 = vmul.f32 %v576, %v576
        %v593 = vmul.f32 %v577, %v577
        %v594 = vmul.f32 %v578, %v578
        %v595 = vmul.f32 %v579, %v579
        %v596 = vmul.f32 %v588, -50.0
        %v597 = vmul.f32 %v589, -50.0
        %v598 = vmul.f32 %v590, -50.0
        %v599 = vmul.f32 %v591, -50.0
        %v600 = vmul.f32 %v592, -50.0
        %v601 = vmul.f32 %v593, -50.0
        %v602 = vmul.f32 %v594, -50.0
        %v603 = vmul.f32 %v595, -50.0
        %v604 = vmul.f32 %v596, 1.442695
        %v605 = vpow.pop %v604
        %v606 = vmul.f32 %v597, 1.442695
        %v607 = vpow.pop %v606
        %v608 = vmul.f32 %v598, 1.442695
        %v609 = vpow.pop %v608
        %v610 = vmul.f32 %v599, 1.442695
        %v611 = vpow.pop %v610
        %v612 = vmul.f32 %v600, 1.442695
        %v613 = vpow.pop %v612
        %v614 = vmul.f32 %v601, 1.442695
        %v615 = vpow.pop %v614
        %v616 = vmul.f32 %v602, 1.442695
        %v617 = vpow.pop %v616
        %v618 = vmul.f32 %v603, 1.442695
        %v619 = vpow.pop %v618
        %v620 = vadd.f32 %v580, %v605
        %v621 = vadd.f32 %v581, %v607
        %v622 = vadd.f32 %v582, %v609
        %v623 = vadd.f32 %v583, %v611
        %v624 = vadd.f32 %v584, %v613
        %v625 = vadd.f32 %v585, %v615
        %v626 = vadd.f32 %v586, %v617
        %v627 = vadd.f32 %v587, %v619
        %628 = vst [vmem:[#allocation2] sm:$0xff] %v620
        %629 = vst [vmem:[#allocation2 + $0x8] sm:$0xff] %v621
        %630 = vst [vmem:[#allocation2 + $0x10] sm:$0xff] %v622
        %631 = vst [vmem:[#allocation2 + $0x18] sm:$0xff] %v623
        %632 = vst [vmem:[#allocation2 + $0x20] sm:$0xff] %v624
        %633 = vst [vmem:[#allocation2 + $0x28] sm:$0xff] %v625
        %634 = vst [vmem:[#allocation2 + $0x30] sm:$0xff] %v626
        %635 = vst [vmem:[#allocation2 + $0x38] sm:$0xff] %v627
        %s636 = scalar_lea.vmem %s152, 5 [#allocation3]
        %v637 = vld [vmem:[%s636] ss:$8 sm:$0xf]
        %v639 = vlaneseq
        %v640 = vshrl.u32 %v639, 7
        %v641 = vsub.s32 0, %v640
        %v642 = vrot.slane %v637, %v641
        %v643 = vlaneseq
        %v644 = vshrl.u32 %v643, 7
        %v645 = vsub.s32 1, %v644
        %v646 = vrot.slane %v637, %v645
        %v647 = vlaneseq
        %v648 = vshrl.u32 %v647, 7
        %v649 = vsub.s32 2, %v648
        %v650 = vrot.slane %v637, %v649
        %v651 = vlaneseq
        %v652 = vshrl.u32 %v651, 7
        %v653 = vsub.s32 3, %v652
        %v654 = vrot.slane %v637, %v653
        %v659 = vsub.f32 %v642, %v217
        %v660 = vsub.f32 %v646, %v217
        %v661 = vsub.f32 %v650, %v217
        %v662 = vsub.f32 %v654, %v217
        %v663 = vsub.f32 %v642, %v222
        %v664 = vsub.f32 %v646, %v222
        %v665 = vsub.f32 %v650, %v222
        %v666 = vsub.f32 %v654, %v222
        %v667 = vld [vmem:[#allocation2] sm:$0xff]
        %v668 = vld [vmem:[#allocation2 + $0x8] sm:$0xff]
        %v669 = vld [vmem:[#allocation2 + $0x10] sm:$0xff]
        %v670 = vld [vmem:[#allocation2 + $0x18] sm:$0xff]
        %v671 = vld [vmem:[#allocation2 + $0x20] sm:$0xff]
        %v672 = vld [vmem:[#allocation2 + $0x28] sm:$0xff]
        %v673 = vld [vmem:[#allocation2 + $0x30] sm:$0xff]
        %v674 = vld [vmem:[#allocation2 + $0x38] sm:$0xff]
        %v675 = vmul.f32 %v659, %v659
        %v676 = vmul.f32 %v660, %v660
        %v677 = vmul.f32 %v661, %v661
        %v678 = vmul.f32 %v662, %v662
        %v679 = vmul.f32 %v663, %v663
        %v680 = vmul.f32 %v664, %v664
        %v681 = vmul.f32 %v665, %v665
        %v682 = vmul.f32 %v666, %v666
        %v683 = vmul.f32 %v675, -50.0
        %v684 = vmul.f32 %v676, -50.0
        %v685 = vmul.f32 %v677, -50.0
        %v686 = vmul.f32 %v678, -50.0
        %v687 = vmul.f32 %v679, -50.0
        %v688 = vmul.f32 %v680, -50.0
        %v689 = vmul.f32 %v681, -50.0
        %v690 = vmul.f32 %v682, -50.0
        %v691 = vmul.f32 %v683, 1.442695
        %v692 = vpow.pop %v691
        %v693 = vmul.f32 %v684, 1.442695
        %v694 = vpow.pop %v693
        %v695 = vmul.f32 %v685, 1.442695
        %v696 = vpow.pop %v695
        %v697 = vmul.f32 %v686, 1.442695
        %v698 = vpow.pop %v697
        %v699 = vmul.f32 %v687, 1.442695
        %v700 = vpow.pop %v699
        %v701 = vmul.f32 %v688, 1.442695
        %v702 = vpow.pop %v701
        %v703 = vmul.f32 %v689, 1.442695
        %v704 = vpow.pop %v703
        %v705 = vmul.f32 %v690, 1.442695
        %v706 = vpow.pop %v705
        %v707 = vadd.f32 %v667, %v692
        %v708 = vadd.f32 %v668, %v694
        %v709 = vadd.f32 %v669, %v696
        %v710 = vadd.f32 %v670, %v698
        %v711 = vadd.f32 %v671, %v700
        %v712 = vadd.f32 %v672, %v702
        %v713 = vadd.f32 %v673, %v704
        %v714 = vadd.f32 %v674, %v706
        %715 = vst [vmem:[#allocation2] sm:$0xff] %v707
        %716 = vst [vmem:[#allocation2 + $0x8] sm:$0xff] %v708
        %717 = vst [vmem:[#allocation2 + $0x10] sm:$0xff] %v709
        %718 = vst [vmem:[#allocation2 + $0x18] sm:$0xff] %v710
        %719 = vst [vmem:[#allocation2 + $0x20] sm:$0xff] %v711
        %720 = vst [vmem:[#allocation2 + $0x28] sm:$0xff] %v712
        %721 = vst [vmem:[#allocation2 + $0x30] sm:$0xff] %v713
        %722 = vst [vmem:[#allocation2 + $0x38] sm:$0xff] %v714
        %s723 = scalar_lea.vmem %s152, 6 [#allocation3]
        %v724 = vld [vmem:[%s723] ss:$8 sm:$0xf]
        %v726 = vlaneseq
        %v727 = vshrl.u32 %v726, 7
        %v728 = vsub.s32 0, %v727
        %v729 = vrot.slane %v724, %v728
        %v730 = vlaneseq
        %v731 = vshrl.u32 %v730, 7
        %v732 = vsub.s32 1, %v731
        %v733 = vrot.slane %v724, %v732
        %v734 = vlaneseq
        %v735 = vshrl.u32 %v734, 7
        %v736 = vsub.s32 2, %v735
        %v737 = vrot.slane %v724, %v736
        %v738 = vlaneseq
        %v739 = vshrl.u32 %v738, 7
        %v740 = vsub.s32 3, %v739
        %v741 = vrot.slane %v724, %v740
        %v746 = vsub.f32 %v729, %v217
        %v747 = vsub.f32 %v733, %v217
        %v748 = vsub.f32 %v737, %v217
        %v749 = vsub.f32 %v741, %v217
        %v750 = vsub.f32 %v729, %v222
        %v751 = vsub.f32 %v733, %v222
        %v752 = vsub.f32 %v737, %v222
        %v753 = vsub.f32 %v741, %v222
        %v754 = vld [vmem:[#allocation2] sm:$0xff]
        %v755 = vld [vmem:[#allocation2 + $0x8] sm:$0xff]
        %v756 = vld [vmem:[#allocation2 + $0x10] sm:$0xff]
        %v757 = vld [vmem:[#allocation2 + $0x18] sm:$0xff]
        %v758 = vld [vmem:[#allocation2 + $0x20] sm:$0xff]
        %v759 = vld [vmem:[#allocation2 + $0x28] sm:$0xff]
        %v760 = vld [vmem:[#allocation2 + $0x30] sm:$0xff]
        %v761 = vld [vmem:[#allocation2 + $0x38] sm:$0xff]
        %v762 = vmul.f32 %v746, %v746
        %v763 = vmul.f32 %v747, %v747
        %v764 = vmul.f32 %v748, %v748
        %v765 = vmul.f32 %v749, %v749
        %v766 = vmul.f32 %v750, %v750
        %v767 = vmul.f32 %v751, %v751
        %v768 = vmul.f32 %v752, %v752
        %v769 = vmul.f32 %v753, %v753
        %v770 = vmul.f32 %v762, -50.0
        %v771 = vmul.f32 %v763, -50.0
        %v772 = vmul.f32 %v764, -50.0
        %v773 = vmul.f32 %v765, -50.0
        %v774 = vmul.f32 %v766, -50.0
        %v775 = vmul.f32 %v767, -50.0
        %v776 = vmul.f32 %v768, -50.0
        %v777 = vmul.f32 %v769, -50.0
        %v778 = vmul.f32 %v770, 1.442695
        %v779 = vpow.pop %v778
        %v780 = vmul.f32 %v771, 1.442695
        %v781 = vpow.pop %v780
        %v782 = vmul.f32 %v772, 1.442695
        %v783 = vpow.pop %v782
        %v784 = vmul.f32 %v773, 1.442695
        %v785 = vpow.pop %v784
        %v786 = vmul.f32 %v774, 1.442695
        %v787 = vpow.pop %v786
        %v788 = vmul.f32 %v775, 1.442695
        %v789 = vpow.pop %v788
        %v790 = vmul.f32 %v776, 1.442695
        %v791 = vpow.pop %v790
        %v792 = vmul.f32 %v777, 1.442695
        %v793 = vpow.pop %v792
        %v794 = vadd.f32 %v754, %v779
        %v795 = vadd.f32 %v755, %v781
        %v796 = vadd.f32 %v756, %v783
        %v797 = vadd.f32 %v757, %v785
        %v798 = vadd.f32 %v758, %v787
        %v799 = vadd.f32 %v759, %v789
        %v800 = vadd.f32 %v760, %v791
        %v801 = vadd.f32 %v761, %v793
        %802 = vst [vmem:[#allocation2] sm:$0xff] %v794
        %803 = vst [vmem:[#allocation2 + $0x8] sm:$0xff] %v795
        %804 = vst [vmem:[#allocation2 + $0x10] sm:$0xff] %v796
        %805 = vst [vmem:[#allocation2 + $0x18] sm:$0xff] %v797
        %806 = vst [vmem:[#allocation2 + $0x20] sm:$0xff] %v798
        %807 = vst [vmem:[#allocation2 + $0x28] sm:$0xff] %v799
        %808 = vst [vmem:[#allocation2 + $0x30] sm:$0xff] %v800
        %809 = vst [vmem:[#allocation2 + $0x38] sm:$0xff] %v801
        %s810 = scalar_lea.vmem %s152, 7 [#allocation3]
        %v811 = vld [vmem:[%s810] ss:$8 sm:$0xf]
        %v813 = vlaneseq
        %v814 = vshrl.u32 %v813, 7
        %v815 = vsub.s32 0, %v814
        %v816 = vrot.slane %v811, %v815
        %v817 = vlaneseq
        %v818 = vshrl.u32 %v817, 7
        %v819 = vsub.s32 1, %v818
        %v820 = vrot.slane %v811, %v819
        %v821 = vlaneseq
        %v822 = vshrl.u32 %v821, 7
        %v823 = vsub.s32 2, %v822
        %v824 = vrot.slane %v811, %v823
        %v825 = vlaneseq
        %v826 = vshrl.u32 %v825, 7
        %v827 = vsub.s32 3, %v826
        %v828 = vrot.slane %v811, %v827
        %v833 = vsub.f32 %v816, %v217
        %v834 = vsub.f32 %v820, %v217
        %v835 = vsub.f32 %v824, %v217
        %v836 = vsub.f32 %v828, %v217
        %v837 = vsub.f32 %v816, %v222
        %v838 = vsub.f32 %v820, %v222
        %v839 = vsub.f32 %v824, %v222
        %v840 = vsub.f32 %v828, %v222
        %v841 = vld [vmem:[#allocation2] sm:$0xff]
        %v842 = vld [vmem:[#allocation2 + $0x8] sm:$0xff]
        %v843 = vld [vmem:[#allocation2 + $0x10] sm:$0xff]
        %v844 = vld [vmem:[#allocation2 + $0x18] sm:$0xff]
        %v845 = vld [vmem:[#allocation2 + $0x20] sm:$0xff]
        %v846 = vld [vmem:[#allocation2 + $0x28] sm:$0xff]
        %v847 = vld [vmem:[#allocation2 + $0x30] sm:$0xff]
        %v848 = vld [vmem:[#allocation2 + $0x38] sm:$0xff]
        %v849 = vmul.f32 %v833, %v833
        %v850 = vmul.f32 %v834, %v834
        %v851 = vmul.f32 %v835, %v835
        %v852 = vmul.f32 %v836, %v836
        %v853 = vmul.f32 %v837, %v837
        %v854 = vmul.f32 %v838, %v838
        %v855 = vmul.f32 %v839, %v839
        %v856 = vmul.f32 %v840, %v840
        %v857 = vmul.f32 %v849, -50.0
        %v858 = vmul.f32 %v850, -50.0
        %v859 = vmul.f32 %v851, -50.0
        %v860 = vmul.f32 %v852, -50.0
        %v861 = vmul.f32 %v853, -50.0
        %v862 = vmul.f32 %v854, -50.0
        %v863 = vmul.f32 %v855, -50.0
        %v864 = vmul.f32 %v856, -50.0
        %v865 = vmul.f32 %v857, 1.442695
        %v866 = vpow.pop %v865
        %v867 = vmul.f32 %v858, 1.442695
        %v868 = vpow.pop %v867
        %v869 = vmul.f32 %v859, 1.442695
        %v870 = vpow.pop %v869
        %v871 = vmul.f32 %v860, 1.442695
        %v872 = vpow.pop %v871
        %v873 = vmul.f32 %v861, 1.442695
        %v874 = vpow.pop %v873
        %v875 = vmul.f32 %v862, 1.442695
        %v876 = vpow.pop %v875
        %v877 = vmul.f32 %v863, 1.442695
        %v878 = vpow.pop %v877
        %v879 = vmul.f32 %v864, 1.442695
        %v880 = vpow.pop %v879
        %v881 = vadd.f32 %v841, %v866
        %v882 = vadd.f32 %v842, %v868
        %v883 = vadd.f32 %v843, %v870
        %v884 = vadd.f32 %v844, %v872
        %v885 = vadd.f32 %v845, %v874
        %v886 = vadd.f32 %v846, %v876
        %v887 = vadd.f32 %v847, %v878
        %v888 = vadd.f32 %v848, %v880
        %889 = vst [vmem:[#allocation2] sm:$0xff] %v881
        %890 = vst [vmem:[#allocation2 + $0x8] sm:$0xff] %v882
        %891 = vst [vmem:[#allocation2 + $0x10] sm:$0xff] %v883
        %892 = vst [vmem:[#allocation2 + $0x18] sm:$0xff] %v884
        %893 = vst [vmem:[#allocation2 + $0x20] sm:$0xff] %v885
        %894 = vst [vmem:[#allocation2 + $0x28] sm:$0xff] %v886
        %895 = vst [vmem:[#allocation2 + $0x30] sm:$0xff] %v887
        %896 = vst [vmem:[#allocation2 + $0x38] sm:$0xff] %v888
        %p897 = scmp.eq.s32.totalorder %s21, 1
        // Predicated region
        $region37: #{tpu_custom_call.1} parent=27 // pred_check
          %p898 = pneg %p897
        $region38: #{tpu_custom_call.1} parent=27 // pred_check_branch
          %900 = sbr.rel (%p898) target = $region40
        $region39: #{tpu_custom_call.1} parent=27 // pred_region
          %v901 = vld [vmem:[#allocation2] sm:$0xff]
          %v902 = vld [vmem:[#allocation2 + $0x8] sm:$0xff]
          %v903 = vld [vmem:[#allocation2 + $0x10] sm:$0xff]
          %v904 = vld [vmem:[#allocation2 + $0x18] sm:$0xff]
          %v905 = vld [vmem:[#allocation2 + $0x20] sm:$0xff]
          %v906 = vld [vmem:[#allocation2 + $0x28] sm:$0xff]
          %v907 = vld [vmem:[#allocation2 + $0x30] sm:$0xff]
          %v908 = vld [vmem:[#allocation2 + $0x38] sm:$0xff]
          %v909 = vadd.f32 %v901, %v902
          %v910 = vadd.f32 %v909, %v903
          %v911 = vadd.f32 %v910, %v904
          %912 = vadd.xlane.f32.xlu0 %v911
          %v913 = vpop.xlane.xlu0 %912
          %v914 = vadd.f32 %v905, %v906
          %v915 = vadd.f32 %v914, %v907
          %v916 = vadd.f32 %v915, %v908
          %917 = vadd.xlane.f32.xlu0 %v916
          %v918 = vpop.xlane.xlu0 %917
          %v919 = vmul.f32 %v913, 0.24933892
          %v920 = vmul.f32 %v918, 0.24933892
          %vm921 = vcmask 7168
          %922 = vst.msk [vmem:[%s177] sm:$0xff] %vm921, %v919
          %923 = vst.msk [vmem:[%s177 + $0x8] sm:$0xff] %vm921, %v920
        $region40: #{tpu_custom_call.1} parent=27 // pred_fallthru
          _
        %p924 = scmp.lt.s32.totalorder %s20, 1
        %s925 = scalar_select %p924, %s20, 1
        %s926 = smul.addr %s925, 2
        %s927 = smul.addr %s926, 8
        %s928 = scalar_lea.vmem %s2, %s927
        // Predicated region
        $region41: #{tpu_custom_call.1} parent=27 // pred_check
          %p929 = pneg %p95
        $region42: #{tpu_custom_call.1} parent=27 // pred_check_branch
          %931 = sbr.rel (%p929) target = $region44
        $region43: #{tpu_custom_call.1} parent=27 // pred_region
          _
        $region44: #{tpu_custom_call.1} parent=27 // pred_fallthru
          _
      $region28: #{tpu_custom_call.1} parent=5 // pred_fallthru
        _
      %p932 = scmp.le.s32.totalorder 2, %s11
      // Predicated region
      $region45: #{tpu_custom_call.1} parent=5 // pred_check
        %p933 = pneg %p932
      $region46: #{tpu_custom_call.1} parent=5 // pred_check_branch
        %935 = sbr.rel (%p933) target = $region48
      $region47: #{tpu_custom_call.1} parent=5 // pred_region
        %s936 = ssub.s32 %s11, 2
        // Predicated region
        $region49: #{tpu_custom_call.1} parent=47 // pred_check
          %p937 = pneg %p101
        $region50: #{tpu_custom_call.1} parent=47 // pred_check_branch
          %939 = sbr.rel (%p937) target = $region52
        $region51: #{tpu_custom_call.1} parent=47 // pred_region
          %p940 = scmp.lt.s32.totalorder %s22, 1
          %s941 = scalar_select %p940, %s22, 1
          %s942 = smul.addr %s941, 2
          %s943 = smul.addr %s942, 8
          %s944 = scalar_lea.vmem %s2, %s943
        $region52: #{tpu_custom_call.1} parent=47 // pred_fallthru
          _
      $region48: #{tpu_custom_call.1} parent=5 // pred_fallthru
        _
    $region6: #{tpu_custom_call.1} parent=1 // loop_footer
      %s15 = sadd.s32 1, %s11
    $region7: #{tpu_custom_call.1} parent=1 // loop_footer_branch
      %10 = sbr.rel target = $region3
    $region8: #{tpu_custom_call.1} parent=1 // loop_exit
      _
    %945 = vsyncpa [#allocation4], 1
    %s946 = scalar_lea.sflag [#allocation4], 1
    %947 = vsyncpa %s946, 1

</llo_original>
